<compile_context>
chip_gen: v7x
topology: tpu7x:2x2x1
jax: 0.10.0
libtpu: 0.0.40
codegen_flags: <defaults>
</compile_context>

<pallas_src>
import jax
import jax.numpy as jnp
from jax.experimental import pallas as pl
from jax.experimental.pallas import tpu as pltpu

GAMMA = 0.1
_NEG_LARGE = -1e30  # inert class-pad value for the logsumexp


def _round_up(x: int, m: int) -> int:
    return ((x + m - 1) // m) * m


def _focal_ldam_kernel(logits_ref, tgt_ref, wy_ref,
                       num_out_ref, den_out_ref,
                       num_acc, den_acc):
    step = pl.program_id(1)

    @pl.when(step == 0)
    def _init():
        num_acc[...] = jnp.zeros_like(num_acc)
        den_acc[...] = jnp.zeros_like(den_acc)

    logits = logits_ref[...].astype(jnp.float32)          # (TN, Cp)
    tgt = tgt_ref[...]                                      # (TN, 1) int32
    w_y = wy_ref[...]                                       # (TN, 1) f32 (precomputed weight[target])

    tn, cp = logits.shape
    cls_ids = jax.lax.broadcasted_iota(jnp.int32, (tn, cp), 1)
    mask = cls_ids == tgt                                   # (TN, Cp) bool

    # Numerically stable log-sum-exp along the class (lane) axis.
    m = jnp.max(logits, axis=-1, keepdims=True)             # (TN, 1)
    lse = m + jnp.log(jnp.sum(jnp.exp(logits - m), axis=-1, keepdims=True))

    # Select the target logit without a dense one-hot matmul.
    logit_y = jnp.sum(jnp.where(mask, logits, 0.0), axis=-1, keepdims=True)
    ce = lse - logit_y                                       # (TN, 1)

    # Per-row vreg-shaped accumulation; reduce to a scalar only at finalize.
    num_acc[...] += w_y * ce
    den_acc[...] += w_y

    @pl.when(step == pl.num_programs(1) - 1)
    def _finalize():
        num_out_ref[...] = jnp.sum(num_acc[...], axis=0, keepdims=True).reshape(1, 1, 1)
        den_out_ref[...] = jnp.sum(den_acc[...], axis=0, keepdims=True).reshape(1, 1, 1)


def focal_loss_ldam(logits: jax.Array,
                    target: jax.Array,
                    weight: jax.Array | None = None,
                    gamma: float = GAMMA,
                    tile_rows: int | None = None) -> jax.Array:
    """logits: (N, C) float, target: (N,) int, weight: (C,) float or None -> scalar f32."""
    assert gamma >= 0, "gamma should be positive"
    n, c = logits.shape
    if weight is None:
        weight = jnp.ones((c,), dtype=jnp.float32)
    weight = weight.astype(jnp.float32)

    c_pad = _round_up(c, 128)
    itemsize = jnp.dtype(logits.dtype).itemsize

    # Leading parallel axis: 2 halves so v7x's two TensorCores split the rows.
    n_par = 2 if n >= 16 else 1
    rows_per_core = pl.cdiv(n, n_par)

    # Per-core VMEM plan, bytes per tile row:
    #   logits double-buffer     : 2 * c_pad * itemsize
    #   target (int32) x2 buffers: 2 * 128 * 4   (lane-padded (tile_n,1) block)
    #   w_y (f32)      x2 buffers: 2 * 128 * 4
    #   num/den (tile_n,1) scratch: 2 * 128 * 4
    bytes_per_row = 2 * c_pad * itemsize + 6 * 128 * 4
    budget = 20 * 1024 * 1024        # fits v7x's 32 MiB scoped VMEM with headroom
    cap = max(8, min(8192, (budget // bytes_per_row) // 8 * 8))

    if tile_rows is None:
        n_steps = max(1, pl.cdiv(rows_per_core, cap))
        tile_n = _round_up(max(8, pl.cdiv(rows_per_core, n_steps)), 8)
    else:
        tile_n = max(8, (tile_rows // 8) * 8)
        n_steps = max(1, pl.cdiv(rows_per_core, tile_n))
    n_pad = n_par * n_steps * tile_n

    # --- padding (mathematically inert) ---
    logits_p = logits
    if c_pad != c:
        logits_p = jnp.pad(
            logits_p, ((0, 0), (0, c_pad - c)),
            constant_values=jnp.asarray(_NEG_LARGE, dtype=logits.dtype))
    if n_pad != n:
        logits_p = jnp.pad(logits_p, ((0, n_pad - n), (0, 0)))     # zero rows

    tgt_p = target.astype(jnp.int32).reshape(n, 1)
    wy_p = weight[target].reshape(n, 1)                             # (N,1) f32 gather from tiny table
    if n_pad != n:
        tgt_p = jnp.pad(tgt_p, ((0, n_pad - n), (0, 0)))            # pad target = 0 (valid, inert)
        wy_p = jnp.pad(wy_p, ((0, n_pad - n), (0, 0)))              # pad w_y = 0 -> padded rows drop out

    row_map = lambda cidx, s: (cidx * n_steps + s, 0)

    cost = pl.CostEstimate(
        flops=6 * n_pad * c_pad,
        transcendentals=n_pad * c_pad,
        bytes_accessed=n_pad * c_pad * itemsize + 2 * n_pad * 4 + 2 * n_par * 4,
    )

    num_part, den_part = pl.pallas_call(
        _focal_ldam_kernel,
        out_shape=(jax.ShapeDtypeStruct((n_par, 1, 1), jnp.float32),
                   jax.ShapeDtypeStruct((n_par, 1, 1), jnp.float32)),
        grid_spec=pltpu.PrefetchScalarGridSpec(
            num_scalar_prefetch=0,
            grid=(n_par, n_steps),
            in_specs=[
                pl.BlockSpec((tile_n, c_pad), row_map),
                pl.BlockSpec((tile_n, 1), row_map),
                pl.BlockSpec((tile_n, 1), row_map),
            ],
            out_specs=(
                pl.BlockSpec((1, 1, 1), lambda cidx, s: (cidx, 0, 0)),
                pl.BlockSpec((1, 1, 1), lambda cidx, s: (cidx, 0, 0)),
            ),
            scratch_shapes=[
                pltpu.VMEM((tile_n, 1), jnp.float32),   # per-row running sum of w_y * ce
                pltpu.VMEM((tile_n, 1), jnp.float32),   # per-row running sum of w_y
            ],
        ),
        compiler_params=pltpu.CompilerParams(
            dimension_semantics=("parallel", "arbitrary"),
            vmem_limit_bytes=32 * 1024 * 1024,
        ),
        cost_estimate=cost,
    )(logits_p, tgt_p, wy_p)

    # Tiny epilogue: combine per-core partials, weighted-mean CE, focal transform.
    num = jnp.sum(num_part)
    den = jnp.sum(den_part)
    ce = num / den                     # NaN if sum of target-class weights == 0 (matches torch)
    p = jnp.exp(-ce)
    return ((1.0 - p) ** gamma) * ce


def _reference(logits, target, weight, gamma=GAMMA):
    logp = jax.nn.log_softmax(logits.astype(jnp.float32), axis=-1)
    nll = -jnp.take_along_axis(logp, target[:, None], axis=-1)[:, 0]
    w_y = weight[target]
    ce = jnp.sum(w_y * nll) / jnp.sum(w_y)
    p = jnp.exp(-ce)
    return ((1.0 - p) ** gamma) * ce


if __name__ == "__main__":
    key = jax.random.PRNGKey(0)
    k1, k2 = jax.random.split(key)

    # Small shapes; tile_rows=16 forces a (2, 2) grid so the parallel axis and
    # the init/accumulate/finalize path are all exercised.
    N, C = 64, 16
    logits = jax.random.normal(k1, (N, C), dtype=jnp.float32)
    target = jax.random.randint(k2, (N,), 0, C, dtype=jnp.int32)
    weight = 0.5 + jnp.arange(C, dtype=jnp.float32) / C   # synthetic class weights

    out = focal_loss_ldam(logits, target, weight, tile_rows=16)
    jax.block_until_ready(out)

    ref = _reference(logits, target, weight)
    assert jnp.allclose(out, ref, rtol=1e-5, atol=1e-5), (out, ref)

    # Also exercise the default (auto-tiled, weight=None) path once.
    out2 = focal_loss_ldam(logits, target, None)
    jax.block_until_ready(out2)
    ref2 = _reference(logits, target, jnp.ones((C,), jnp.float32))
    assert jnp.allclose(out2, ref2, rtol=1e-5, atol=1e-5), (out2, ref2)

    print("KERNEL_OK")
</pallas_src>

<mosaic_0001>
module attributes {stable_mosaic.version = 11 : i64} {
  func.func @_focal_ldam_kernel(%arg0: i32, %arg1: i32, %arg2: memref<16x128xf32, #tpu.memory_space<vmem>>, %arg3: memref<16x1xi32, #tpu.memory_space<vmem>>, %arg4: memref<16x1xf32, #tpu.memory_space<vmem>>, %arg5: memref<1x1x1xf32, #tpu.memory_space<vmem>>, %arg6: memref<1x1x1xf32, #tpu.memory_space<vmem>>, %arg7: memref<16x1xf32, #tpu.memory_space<vmem>>, %arg8: memref<16x1xf32, #tpu.memory_space<vmem>>) attributes {dimension_semantics = [#tpu.dimension_semantics<parallel>, #tpu.dimension_semantics<arbitrary>], iteration_bounds = array<i64: 2, 2>, scalar_prefetch = 0 : i64, scratch_operands = 2 : i64, tpu.core_type = #tpu.core_type<tc>, window_params = [{transform_indices = @transform_0, window_bounds = array<i64: 16, 128>}, {transform_indices = @transform_1, window_bounds = array<i64: 16, 1>}, {transform_indices = @transform_2, window_bounds = array<i64: 16, 1>}, {transform_indices = @transform_3, window_bounds = array<i64: 1, 1, 1>}, {transform_indices = @transform_4, window_bounds = array<i64: 1, 1, 1>}]} {
    %c0_i32 = arith.constant 0 : i32
    %0 = arith.cmpi eq, %arg1, %c0_i32 : i32
    %1 = arith.extui %0 : i1 to i32
    %c0_i32_0 = arith.constant 0 : i32
    %2 = arith.cmpi ne, %1, %c0_i32_0 : i32
    scf.if %2 {
      %cst_18 = arith.constant 0.000000e+00 : f32
      %33 = vector.broadcast %cst_18 : f32 to vector<16x1xf32>
      %c0_19 = arith.constant 0 : index
      %c0_20 = arith.constant 0 : index
      %34 = vector.load %arg7[%c0_19, %c0_20] : memref<16x1xf32, #tpu.memory_space<vmem>>, vector<16x1xf32>
      tpu.vector_store %arg7[%c0_19, %c0_20], %33 {strides = array<i32>} : memref<16x1xf32, #tpu.memory_space<vmem>>, vector<16x1xf32>,
      %cst_21 = arith.constant 0.000000e+00 : f32
      %35 = vector.broadcast %cst_21 : f32 to vector<16x1xf32>
      %c0_22 = arith.constant 0 : index
      %c0_23 = arith.constant 0 : index
      %36 = vector.load %arg8[%c0_22, %c0_23] : memref<16x1xf32, #tpu.memory_space<vmem>>, vector<16x1xf32>
      tpu.vector_store %arg8[%c0_22, %c0_23], %35 {strides = array<i32>} : memref<16x1xf32, #tpu.memory_space<vmem>>, vector<16x1xf32>,
    } else {
    }
    %c0 = arith.constant 0 : index
    %c0_1 = arith.constant 0 : index
    %3 = vector.load %arg2[%c0, %c0_1] : memref<16x128xf32, #tpu.memory_space<vmem>>, vector<16x128xf32>
    %c0_2 = arith.constant 0 : index
    %c0_3 = arith.constant 0 : index
    %4 = vector.load %arg3[%c0_2, %c0_3] : memref<16x1xi32, #tpu.memory_space<vmem>>, vector<16x1xi32>
    %c0_4 = arith.constant 0 : index
    %c0_5 = arith.constant 0 : index
    %5 = vector.load %arg4[%c0_4, %c0_5] : memref<16x1xf32, #tpu.memory_space<vmem>>, vector<16x1xf32>
    %6 = tpu.iota {dimensions = array<i32: 1>} : vector<16x128xi32>
    %7 = vector.broadcast %4 : vector<16x1xi32> to vector<16x128xi32>
    %8 = arith.cmpi eq, %6, %7 : vector<16x128xi32>
    %cst = arith.constant dense<0xFF800000> : vector<16xf32>
    %9 = vector.multi_reduction <maximumf>, %3, %cst [1] : vector<16x128xf32> to vector<16xf32>
    %10 = vector.shape_cast %9 : vector<16xf32> to vector<16x1xf32>
    %11 = vector.broadcast %10 : vector<16x1xf32> to vector<16x128xf32>
    %12 = arith.subf %3, %11 : vector<16x128xf32>
    %13 = math.exp %12 : vector<16x128xf32>
    %cst_6 = arith.constant dense<0.000000e+00> : vector<16xf32>
    %14 = vector.multi_reduction <add>, %13, %cst_6 [1] : vector<16x128xf32> to vector<16xf32>
    %15 = vector.shape_cast %14 : vector<16xf32> to vector<16x1xf32>
    %16 = math.log %15 : vector<16x1xf32>
    %17 = arith.addf %10, %16 : vector<16x1xf32>
    %cst_7 = arith.constant 0.000000e+00 : f32
    %18 = vector.broadcast %cst_7 : f32 to vector<16x128xf32>
    %19 = arith.select %8, %3, %18 : vector<16x128xi1>, vector<16x128xf32>
    %cst_8 = arith.constant dense<0.000000e+00> : vector<16xf32>
    %20 = vector.multi_reduction <add>, %19, %cst_8 [1] : vector<16x128xf32> to vector<16xf32>
    %21 = vector.shape_cast %20 : vector<16xf32> to vector<16x1xf32>
    %22 = arith.subf %17, %21 : vector<16x1xf32>
    %c0_9 = arith.constant 0 : index
    %c0_10 = arith.constant 0 : index
    %23 = vector.load %arg7[%c0_9, %c0_10] : memref<16x1xf32, #tpu.memory_space<vmem>>, vector<16x1xf32>
    %24 = arith.mulf %5, %22 : vector<16x1xf32>
    %25 = arith.addf %23, %24 : vector<16x1xf32>
    %c0_11 = arith.constant 0 : index
    %c0_12 = arith.constant 0 : index
    %26 = vector.load %arg7[%c0_11, %c0_12] : memref<16x1xf32, #tpu.memory_space<vmem>>, vector<16x1xf32>
    tpu.vector_store %arg7[%c0_11, %c0_12], %25 {strides = array<i32>} : memref<16x1xf32, #tpu.memory_space<vmem>>, vector<16x1xf32>,
    %c0_13 = arith.constant 0 : index
    %c0_14 = arith.constant 0 : index
    %27 = vector.load %arg8[%c0_13, %c0_14] : memref<16x1xf32, #tpu.memory_space<vmem>>, vector<16x1xf32>
    %28 = arith.addf %27, %5 : vector<16x1xf32>
    %c0_15 = arith.constant 0 : index
    %c0_16 = arith.constant 0 : index
    %29 = vector.load %arg8[%c0_15, %c0_16] : memref<16x1xf32, #tpu.memory_space<vmem>>, vector<16x1xf32>
    tpu.vector_store %arg8[%c0_15, %c0_16], %28 {strides = array<i32>} : memref<16x1xf32, #tpu.memory_space<vmem>>, vector<16x1xf32>,
    %c1_i32 = arith.constant 1 : i32
    %30 = arith.cmpi eq, %arg1, %c1_i32 : i32
    %31 = arith.extui %30 : i1 to i32
    %c0_i32_17 = arith.constant 0 : i32
    %32 = arith.cmpi ne, %31, %c0_i32_17 : i32
    scf.if %32 {
      %c0_18 = arith.constant 0 : index
      %c0_19 = arith.constant 0 : index
      %33 = vector.load %arg7[%c0_18, %c0_19] : memref<16x1xf32, #tpu.memory_space<vmem>>, vector<16x1xf32>
      %cst_20 = arith.constant dense<0.000000e+00> : vector<1xf32>
      %34 = vector.multi_reduction <add>, %33, %cst_20 [0] : vector<16x1xf32> to vector<1xf32>
      %35 = vector.shape_cast %34 : vector<1xf32> to vector<1x1xf32>
      %36 = vector.shape_cast %35 : vector<1x1xf32> to vector<1x1x1xf32>
      %c0_21 = arith.constant 0 : index
      %c0_22 = arith.constant 0 : index
      %c0_23 = arith.constant 0 : index
      %37 = vector.load %arg5[%c0_21, %c0_22, %c0_23] : memref<1x1x1xf32, #tpu.memory_space<vmem>>, vector<1x1x1xf32>
      tpu.vector_store %arg5[%c0_21, %c0_22, %c0_23], %36 {strides = array<i32>} : memref<1x1x1xf32, #tpu.memory_space<vmem>>, vector<1x1x1xf32>,
      %c0_24 = arith.constant 0 : index
      %c0_25 = arith.constant 0 : index
      %38 = vector.load %arg8[%c0_24, %c0_25] : memref<16x1xf32, #tpu.memory_space<vmem>>, vector<16x1xf32>
      %cst_26 = arith.constant dense<0.000000e+00> : vector<1xf32>
      %39 = vector.multi_reduction <add>, %38, %cst_26 [0] : vector<16x1xf32> to vector<1xf32>
      %40 = vector.shape_cast %39 : vector<1xf32> to vector<1x1xf32>
      %41 = vector.shape_cast %40 : vector<1x1xf32> to vector<1x1x1xf32>
      %c0_27 = arith.constant 0 : index
      %c0_28 = arith.constant 0 : index
      %c0_29 = arith.constant 0 : index
      %42 = vector.load %arg6[%c0_27, %c0_28, %c0_29] : memref<1x1x1xf32, #tpu.memory_space<vmem>>, vector<1x1x1xf32>
      tpu.vector_store %arg6[%c0_27, %c0_28, %c0_29], %41 {strides = array<i32>} : memref<1x1x1xf32, #tpu.memory_space<vmem>>, vector<1x1x1xf32>,
    } else {
    }
    return
  }
  func.func @transform_0(%arg0: i32, %arg1: i32) -> (i32, i32) {
    %c2_i32 = arith.constant 2 : i32
    %0 = arith.muli %arg0, %c2_i32 : i32
    %1 = arith.addi %0, %arg1 : i32
    %c0_i32 = arith.constant 0 : i32
    %c0_i32_0 = arith.constant 0 : i32
    return %1, %c0_i32 : i32, i32
  }
  func.func @transform_1(%arg0: i32, %arg1: i32) -> (i32, i32) {
    %c2_i32 = arith.constant 2 : i32
    %0 = arith.muli %arg0, %c2_i32 : i32
    %1 = arith.addi %0, %arg1 : i32
    %c0_i32 = arith.constant 0 : i32
    %c0_i32_0 = arith.constant 0 : i32
    return %1, %c0_i32 : i32, i32
  }
  func.func @transform_2(%arg0: i32, %arg1: i32) -> (i32, i32) {
    %c2_i32 = arith.constant 2 : i32
    %0 = arith.muli %arg0, %c2_i32 : i32
    %1 = arith.addi %0, %arg1 : i32
    %c0_i32 = arith.constant 0 : i32
    %c0_i32_0 = arith.constant 0 : i32
    return %1, %c0_i32 : i32, i32
  }
  func.func @transform_3(%arg0: i32, %arg1: i32) -> (i32, i32, i32) {
    %c0_i32 = arith.constant 0 : i32
    %c0_i32_0 = arith.constant 0 : i32
    %c0_i32_1 = arith.constant 0 : i32
    return %arg0, %c0_i32, %c0_i32_0 : i32, i32, i32
  }
  func.func @transform_4(%arg0: i32, %arg1: i32) -> (i32, i32, i32) {
    %c0_i32 = arith.constant 0 : i32
    %c0_i32_0 = arith.constant 0 : i32
    %c0_i32_1 = arith.constant 0 : i32
    return %arg0, %c0_i32, %c0_i32_0 : i32, i32, i32
  }
}

</mosaic_0001>

<llo_original>
// kernel: tpu_custom_call.1
$region0: #{tpu_custom_call.1}
  #allocation0 [shape = 'u32[]', space=smem, size = 0x4, offset = 0x4, fixed_abs, tag = 'smem constant byte address 0x4 - core index']
  #allocation1 [shape = 'u32[144,128]{1,0:T(1,128)}', space=vmem, size = 0x12000, scoped, tag = 'internal scratch']
  #allocation2 [shape = 'f32[16,1]{1,0:T(8,128)}', space=vmem, size = 0x2000, scoped, tag = 'scratch operand']
  #allocation3 [shape = 'f32[16,1]{1,0:T(8,128)}', space=vmem, size = 0x2000, scoped, tag = 'scratch operand']
  %s0 = inlined_call_operand.vmem [shape: f32[64,128], index: 0, kind: input, shape index: {}]
  %s1 = inlined_call_operand.vmem [shape: s32[64,1], index: 1, kind: input, shape index: {}]
  %s2 = inlined_call_operand.vmem [shape: f32[64,1], index: 2, kind: input, shape index: {}]
  %s3 = inlined_call_operand.vmem [shape: f32[2,1,1], index: 3, kind: output, shape index: {0}]
  %s4 = inlined_call_operand.vmem [shape: f32[2,1,1], index: 4, kind: output, shape index: {1}]
  %5 = xla_tuple %s3, %s4
  %s6 = sld [smem:[#allocation0]]
  $region61: #{tpu_custom_call.1} parent=0
    _
  %s8 = ssub.s32 1, %s6
  %s9 = scalar_select 0, %s8, %s6
  loop: start=0, step=1, limit=6
  $region2: #{tpu_custom_call.1} parent=0 // loop_pre_header
    _
  $region3: #{tpu_custom_call.1} parent=0 // loop_header
    %s11 = sphi 0, %s15
    %p12 = scmp.ge.s32.totalorder %s11, 6
    %s18 = sphi 0, %s30
    %s19 = sphi 0, %s26
    %s20 = sphi 0, %s18
    %s21 = sphi 0, %s19
    %s22 = sphi 0, %s20
    %s23 = sphi 0, %s21
    %s37 = sphi 0, %s39
    %s40 = sphi 0, %s37
    %s41 = sphi 0, %s40
    %s57 = sphi 0, %s41
    %s67 = sphi 0, %s69
    %s70 = sphi 0, %s67
    %s71 = sphi 0, %s70
    %s87 = sphi 0, %s71
    %s97 = sphi 0, %s99
    %s100 = sphi 0, %s97
    %s101 = sphi 0, %s100
    %s117 = sphi 0, %s101
    %s123 = sphi 0, %s125
    %s126 = sphi 0, %s123
    %s127 = sphi 0, %s126
    %s143 = sphi 0, %s127
    %s149 = sphi 0, %s151
    %s152 = sphi 0, %s149
    %s153 = sphi 0, %s152
    %s169 = sphi 0, %s153
  $region4: #{tpu_custom_call.1} parent=0 // loop_header_branch
    %14 = sbr.rel (%p12) target = $region8
  $region5: #{tpu_custom_call.1} parent=0 // loop_body
    %s16 = ssub.s32 %s11, 1
    %s17 = ssub.s32 %s11, 2
    %s24 = sadd.s32 1, %s19
    %p25 = scmp.ge.s32.totalorder %s24, 2
    %s26 = scalar_select %p25, 0, %s24
    %s27 = sadd.s32 1, %s18
    %s28 = scalar_select %p25, %s27, %s18
    %p29 = scmp.ge.s32.totalorder %s28, 2
    %s30 = scalar_select %p29, 0, %s28
    %s31 = smul.u32 %s18, 2
    %s32 = sadd.s32 %s31, %s19
    %s33 = smul.u32 %s30, 2
    %s34 = sadd.s32 %s33, %s26
    %s35 = ssub.s32 %s32, %s34
    %p36 = scmp.eq.s32.totalorder %s35, 0
    %s38 = sadd.s32 %s37, 1
    %s39 = scalar_select %p36, %s37, %s38
    %p42 = pneg %p36
    %p43 = scmp.eq.s32.totalorder %s11, 3
    %p44 = por %p42, %p43
    %p45 = scmp.ne.s32.totalorder %s37, %s40
    %p46 = scmp.eq.s32.totalorder %s11, 0
    %p47 = por %p45, %p46
    %p48 = scmp.ne.s32.totalorder %s37, %s40
    %p49 = scmp.eq.s32.totalorder %s16, 3
    %p50 = por %p48, %p49
    %p51 = scmp.ne.s32.totalorder %s40, %s41
    %p52 = scmp.eq.s32.totalorder %s16, 0
    %p53 = por %p51, %p52
    %p54 = scmp.ne.s32.totalorder %s40, %s41
    %p55 = scmp.eq.s32.totalorder %s17, 3
    %p56 = por %p54, %p55
    %p58 = scmp.ne.s32.totalorder %s41, %s57
    %p59 = scmp.eq.s32.totalorder %s17, 0
    %p60 = por %p58, %p59
    %s61 = smul.u32 %s18, 2
    %s62 = sadd.s32 %s61, %s19
    %s63 = smul.u32 %s30, 2
    %s64 = sadd.s32 %s63, %s26
    %s65 = ssub.s32 %s62, %s64
    %p66 = scmp.eq.s32.totalorder %s65, 0
    %s68 = sadd.s32 %s67, 1
    %s69 = scalar_select %p66, %s67, %s68
    %p72 = pneg %p66
    %p73 = scmp.eq.s32.totalorder %s11, 3
    %p74 = por %p72, %p73
    %p75 = scmp.ne.s32.totalorder %s67, %s70
    %p76 = scmp.eq.s32.totalorder %s11, 0
    %p77 = por %p75, %p76
    %p78 = scmp.ne.s32.totalorder %s67, %s70
    %p79 = scmp.eq.s32.totalorder %s16, 3
    %p80 = por %p78, %p79
    %p81 = scmp.ne.s32.totalorder %s70, %s71
    %p82 = scmp.eq.s32.totalorder %s16, 0
    %p83 = por %p81, %p82
    %p84 = scmp.ne.s32.totalorder %s70, %s71
    %p85 = scmp.eq.s32.totalorder %s17, 3
    %p86 = por %p84, %p85
    %p88 = scmp.ne.s32.totalorder %s71, %s87
    %p89 = scmp.eq.s32.totalorder %s17, 0
    %p90 = por %p88, %p89
    %s91 = smul.u32 %s18, 2
    %s92 = sadd.s32 %s91, %s19
    %s93 = smul.u32 %s30, 2
    %s94 = sadd.s32 %s93, %s26
    %s95 = ssub.s32 %s92, %s94
    %p96 = scmp.eq.s32.totalorder %s95, 0
    %s98 = sadd.s32 %s97, 1
    %s99 = scalar_select %p96, %s97, %s98
    %p102 = pneg %p96
    %p103 = scmp.eq.s32.totalorder %s11, 3
    %p104 = por %p102, %p103
    %p105 = scmp.ne.s32.totalorder %s97, %s100
    %p106 = scmp.eq.s32.totalorder %s11, 0
    %p107 = por %p105, %p106
    %p108 = scmp.ne.s32.totalorder %s97, %s100
    %p109 = scmp.eq.s32.totalorder %s16, 3
    %p110 = por %p108, %p109
    %p111 = scmp.ne.s32.totalorder %s100, %s101
    %p112 = scmp.eq.s32.totalorder %s16, 0
    %p113 = por %p111, %p112
    %p114 = scmp.ne.s32.totalorder %s100, %s101
    %p115 = scmp.eq.s32.totalorder %s17, 3
    %p116 = por %p114, %p115
    %p118 = scmp.ne.s32.totalorder %s101, %s117
    %p119 = scmp.eq.s32.totalorder %s17, 0
    %p120 = por %p118, %p119
    %s121 = ssub.s32 %s18, %s30
    %p122 = scmp.eq.s32.totalorder %s121, 0
    %s124 = sadd.s32 %s123, 1
    %s125 = scalar_select %p122, %s123, %s124
    %p128 = pneg %p122
    %p129 = scmp.eq.s32.totalorder %s11, 3
    %p130 = por %p128, %p129
    %p131 = scmp.ne.s32.totalorder %s123, %s126
    %p132 = scmp.eq.s32.totalorder %s11, 0
    %p133 = por %p131, %p132
    %p134 = scmp.ne.s32.totalorder %s123, %s126
    %p135 = scmp.eq.s32.totalorder %s16, 3
    %p136 = por %p134, %p135
    %p137 = scmp.ne.s32.totalorder %s126, %s127
    %p138 = scmp.eq.s32.totalorder %s16, 0
    %p139 = por %p137, %p138
    %p140 = scmp.ne.s32.totalorder %s126, %s127
    %p141 = scmp.eq.s32.totalorder %s17, 3
    %p142 = por %p140, %p141
    %p144 = scmp.ne.s32.totalorder %s127, %s143
    %p145 = scmp.eq.s32.totalorder %s17, 0
    %p146 = por %p144, %p145
    %s147 = ssub.s32 %s18, %s30
    %p148 = scmp.eq.s32.totalorder %s147, 0
    %s150 = sadd.s32 %s149, 1
    %s151 = scalar_select %p148, %s149, %s150
    %p154 = pneg %p148
    %p155 = scmp.eq.s32.totalorder %s11, 3
    %p156 = por %p154, %p155
    %p157 = scmp.ne.s32.totalorder %s149, %s152
    %p158 = scmp.eq.s32.totalorder %s11, 0
    %p159 = por %p157, %p158
    %p160 = scmp.ne.s32.totalorder %s149, %s152
    %p161 = scmp.eq.s32.totalorder %s16, 3
    %p162 = por %p160, %p161
    %p163 = scmp.ne.s32.totalorder %s152, %s153
    %p164 = scmp.eq.s32.totalorder %s16, 0
    %p165 = por %p163, %p164
    %p166 = scmp.ne.s32.totalorder %s152, %s153
    %p167 = scmp.eq.s32.totalorder %s17, 3
    %p168 = por %p166, %p167
    %p170 = scmp.ne.s32.totalorder %s153, %s169
    %p171 = scmp.eq.s32.totalorder %s17, 0
    %p172 = por %p170, %p171
    %p173 = scmp.le.s32.totalorder 1, %s11
    %p174 = scmp.lt.s32.totalorder %s11, 5
    %p175 = pnand %p173, %p174
    %p176 = pneg %p175
    // Predicated region
    $region9: #{tpu_custom_call.1} parent=5 // pred_check
      _
    $region10: #{tpu_custom_call.1} parent=5 // pred_check_branch
      %178 = sbr.rel (%p175) target = $region12
    $region11: #{tpu_custom_call.1} parent=5 // pred_region
      %s179 = ssub.s32 %s11, 1
    $region12: #{tpu_custom_call.1} parent=5 // pred_fallthru
      _
    %p180 = scmp.lt.s32.totalorder %s11, 4
    // Predicated region
    $region13: #{tpu_custom_call.1} parent=5 // pred_check
      %p181 = pneg %p180
    $region14: #{tpu_custom_call.1} parent=5 // pred_check_branch
      %183 = sbr.rel (%p181) target = $region16
    $region15: #{tpu_custom_call.1} parent=5 // pred_region
      // Predicated region
      $region17: #{tpu_custom_call.1} parent=15 // pred_check
        %p184 = pneg %p47
      $region18: #{tpu_custom_call.1} parent=15 // pred_check_branch
        %186 = sbr.rel (%p184) target = $region20
      $region19: #{tpu_custom_call.1} parent=15 // pred_region
        %s187 = smul.u32 %s18, 2
        %s188 = sadd.s32 %s187, %s19
        %s189 = smul.u32 2, %s188
        %p190 = scmp.lt.s32.totalorder %s189, 7
        %s191 = scalar_select %p190, %s189, 7
        %s192 = smul.addr %s191, 8
        %s193 = scalar_lea.vmem %s0, %s192
        %s194 = smul.u32 %s18, 2
        %s195 = sadd.s32 %s194, %s19
        %s196 = smul.u32 2, %s195
      $region20: #{tpu_custom_call.1} parent=15 // pred_fallthru
        _
      // Predicated region
      $region21: #{tpu_custom_call.1} parent=15 // pred_check
        %p197 = pneg %p77
      $region22: #{tpu_custom_call.1} parent=15 // pred_check_branch
        %199 = sbr.rel (%p197) target = $region24
      $region23: #{tpu_custom_call.1} parent=15 // pred_region
        %s200 = smul.u32 %s18, 2
        %s201 = sadd.s32 %s200, %s19
        %s202 = smul.u32 2, %s201
        %p203 = scmp.lt.s32.totalorder %s202, 7
        %s204 = scalar_select %p203, %s202, 7
        %s205 = smul.addr %s204, 8
        %s206 = scalar_lea.vmem %s1, %s205
        %s207 = smul.u32 %s18, 2
        %s208 = sadd.s32 %s207, %s19
        %s209 = smul.u32 2, %s208
      $region24: #{tpu_custom_call.1} parent=15 // pred_fallthru
        _
      // Predicated region
      $region25: #{tpu_custom_call.1} parent=15 // pred_check
        %p210 = pneg %p107
      $region26: #{tpu_custom_call.1} parent=15 // pred_check_branch
        %212 = sbr.rel (%p210) target = $region28
      $region27: #{tpu_custom_call.1} parent=15 // pred_region
        %s213 = smul.u32 %s18, 2
        %s214 = sadd.s32 %s213, %s19
        %s215 = smul.u32 2, %s214
        %p216 = scmp.lt.s32.totalorder %s215, 7
        %s217 = scalar_select %p216, %s215, 7
        %s218 = smul.addr %s217, 8
        %s219 = scalar_lea.vmem %s2, %s218
        %s220 = smul.u32 %s18, 2
        %s221 = sadd.s32 %s220, %s19
        %s222 = smul.u32 2, %s221
      $region28: #{tpu_custom_call.1} parent=15 // pred_fallthru
        _
    $region16: #{tpu_custom_call.1} parent=5 // pred_fallthru
      _
    %p223 = scmp.le.s32.totalorder 1, %s11
    %p224 = scmp.lt.s32.totalorder %s11, 5
    %p225 = pnand %p223, %p224
    %p226 = pneg %p225
    // Predicated region
    $region29: #{tpu_custom_call.1} parent=5 // pred_check
      _
    $region30: #{tpu_custom_call.1} parent=5 // pred_check_branch
      %228 = sbr.rel (%p225) target = $region32
    $region31: #{tpu_custom_call.1} parent=5 // pred_region
      %s229 = ssub.s32 %s11, 1
      %s230 = smul.u32 %s20, 2
      %s231 = sadd.s32 %s230, %s21
      %s232 = smul.u32 2, %s231
      %p233 = scmp.lt.s32.totalorder %s232, 7
      %s234 = scalar_select %p233, %s232, 7
      %s235 = smul.addr %s234, 8
      %s236 = scalar_lea.vmem %s0, %s235
      %p237 = pneg %p53
      %p238 = pneg %p50
      %s239 = smul.u32 %s20, 2
      %s240 = sadd.s32 %s239, %s21
      %s241 = smul.u32 2, %s240
      %p242 = scmp.lt.s32.totalorder %s241, 7
      %s243 = scalar_select %p242, %s241, 7
      %s244 = smul.addr %s243, 8
      %s245 = scalar_lea.vmem %s1, %s244
      %p246 = pneg %p83
      %p247 = pneg %p80
      %s248 = smul.u32 %s20, 2
      %s249 = sadd.s32 %s248, %s21
      %s250 = smul.u32 2, %s249
      %p251 = scmp.lt.s32.totalorder %s250, 7
      %s252 = scalar_select %p251, %s250, 7
      %s253 = smul.addr %s252, 8
      %s254 = scalar_lea.vmem %s2, %s253
      %p255 = pneg %p113
      %p256 = pneg %p110
      %p257 = pneg %p139
      %p258 = pneg %p136
      %p259 = scmp.lt.s32.totalorder %s20, 1
      %s260 = scalar_select %p259, %s20, 1
      %s261 = scalar_lea.vmem %s3, %s260
      %p262 = pneg %p165
      %p263 = pneg %p162
      %p264 = scmp.lt.s32.totalorder %s20, 1
      %s265 = scalar_select %p264, %s20, 1
      %s266 = scalar_lea.vmem %s4, %s265
      %s267 = smul.u32 %s20, 2
      %s268 = sadd.s32 %s267, %s21
      %s269 = smul.u32 2, %s268
      %p270 = scmp.lt.s32.totalorder %s269, 7
      %s271 = scalar_select %p270, %s269, 7
      %s272 = smul.addr %s271, 8
      %s273 = scalar_lea.vmem %s0, %s272
      %s274 = smul.u32 %s20, 2
      %s275 = sadd.s32 %s274, %s21
      %s276 = smul.u32 2, %s275
      %s277 = smul.u32 %s20, 2
      %s278 = sadd.s32 %s277, %s21
      %s279 = smul.u32 2, %s278
      %p280 = scmp.lt.s32.totalorder %s279, 7
      %s281 = scalar_select %p280, %s279, 7
      %s282 = smul.addr %s281, 8
      %s283 = scalar_lea.vmem %s1, %s282
      %s284 = smul.u32 %s20, 2
      %s285 = sadd.s32 %s284, %s21
      %s286 = smul.u32 2, %s285
      %s287 = smul.u32 %s20, 2
      %s288 = sadd.s32 %s287, %s21
      %s289 = smul.u32 2, %s288
      %p290 = scmp.lt.s32.totalorder %s289, 7
      %s291 = scalar_select %p290, %s289, 7
      %s292 = smul.addr %s291, 8
      %s293 = scalar_lea.vmem %s2, %s292
      %s294 = smul.u32 %s20, 2
      %s295 = sadd.s32 %s294, %s21
      %s296 = smul.u32 2, %s295
      %p297 = scmp.lt.s32.totalorder %s20, 1
      %s298 = scalar_select %p297, %s20, 1
      %s299 = scalar_lea.vmem %s3, %s298
      %p300 = scmp.lt.s32.totalorder %s20, 1
      %s301 = scalar_select %p300, %s20, 1
      %s302 = scalar_lea.vmem %s4, %s301
      %p303 = scmp.eq.s32.totalorder %s21, 0
      // Predicated region
      $region33: #{tpu_custom_call.1} parent=31 // pred_check
        %p304 = pneg %p303
      $region34: #{tpu_custom_call.1} parent=31 // pred_check_branch
        %306 = sbr.rel (%p304) target = $region36
      $region35: #{tpu_custom_call.1} parent=31 // pred_region
        %vm307 = vcmask 7168
        %308 = vst.msk [vmem:[#allocation2] sm:$0xff] %vm307, 0.0
        %309 = vst.msk [vmem:[#allocation2 + $0x8] sm:$0xff] %vm307, 0.0
        %310 = vst.msk [vmem:[#allocation3] sm:$0xff] %vm307, 0.0
        %311 = vst.msk [vmem:[#allocation3 + $0x8] sm:$0xff] %vm307, 0.0
      $region36: #{tpu_custom_call.1} parent=31 // pred_fallthru
        _
      %v312 = vld [vmem:[%s273] sm:$0xff]
      %v313 = vld [vmem:[%s273 + $0x8] sm:$0xff]
      %v314 = vld [vmem:[%s283] sm:$0xff]
      %v315 = vld [vmem:[%s283 + $0x8] sm:$0xff]
      %v316 = vld [vmem:[%s293] sm:$0xff]
      %v317 = vld [vmem:[%s293 + $0x8] sm:$0xff]
      %v318 = vlaneseq
      %v319 = vand.u32 %v318, 127
      %320 = vset.pattern.permute.xlu0 0
      %321 = vperm.xlu0 %320, %v314
      %v322 = vpop.permute.xlu0 %321
      %323 = vset.pattern.permute.xlu0 0
      %324 = vperm.xlu0 %323, %v315
      %v325 = vpop.permute.xlu0 %324
      %vm326 = vcmp.eq.s32.totalorder %v319, %v322
      %vm327 = vcmp.eq.s32.totalorder %v319, %v325
      %328 = vmax.xlane.f32.xlu0 %v312
      %v329 = vpop.xlane.xlu0 %328
      %330 = vmax.xlane.f32.xlu0 %v313
      %v331 = vpop.xlane.xlu0 %330
      %v332 = vsub.f32 %v312, %v329
      %v333 = vsub.f32 %v313, %v331
      %v334 = vmul.f32 %v332, 1.442695
      %v335 = vpow.pop %v334
      %v336 = vmul.f32 %v333, 1.442695
      %v337 = vpow.pop %v336
      %338 = vadd.xlane.f32.xlu0 %v335
      %v339 = vpop.xlane.xlu0 %338
      %340 = vadd.xlane.f32.xlu0 %v337
      %v341 = vpop.xlane.xlu0 %340
      %v342 = vlog2.pop %v339
      %v343 = vmul.f32 %v342, 0.6931472
      %v344 = vlog2.pop %v341
      %v345 = vmul.f32 %v344, 0.6931472
      %v346 = vadd.f32 %v329, %v343
      %v347 = vadd.f32 %v331, %v345
      %v348 = vsel %vm326, %v312, 0.0
      %v349 = vsel %vm327, %v313, 0.0
      %350 = vadd.xlane.f32.xlu0 %v348
      %v351 = vpop.xlane.xlu0 %350
      %352 = vadd.xlane.f32.xlu0 %v349
      %v353 = vpop.xlane.xlu0 %352
      %v354 = vsub.f32 %v346, %v351
      %v355 = vsub.f32 %v347, %v353
      %v356 = vld [vmem:[#allocation2] sm:$0xff]
      %v357 = vld [vmem:[#allocation2 + $0x8] sm:$0xff]
      %v358 = vmul.f32 %v316, %v354
      %v359 = vmul.f32 %v317, %v355
      %v360 = vadd.f32 %v356, %v358
      %v361 = vadd.f32 %v357, %v359
      %vm362 = vcmask 7168
      %363 = vst.msk [vmem:[#allocation2] sm:$0xff] %vm362, %v360
      %364 = vst.msk [vmem:[#allocation2 + $0x8] sm:$0xff] %vm362, %v361
      %v365 = vld [vmem:[#allocation3] sm:$0xff]
      %v366 = vld [vmem:[#allocation3 + $0x8] sm:$0xff]
      %v367 = vadd.f32 %v365, %v316
      %v368 = vadd.f32 %v366, %v317
      %369 = vst.msk [vmem:[#allocation3] sm:$0xff] %vm362, %v367
      %370 = vst.msk [vmem:[#allocation3 + $0x8] sm:$0xff] %vm362, %v368
      %p371 = scmp.eq.s32.totalorder %s21, 1
      // Predicated region
      $region37: #{tpu_custom_call.1} parent=31 // pred_check
        %p372 = pneg %p371
      $region38: #{tpu_custom_call.1} parent=31 // pred_check_branch
        %374 = sbr.rel (%p372) target = $region40
      $region39: #{tpu_custom_call.1} parent=31 // pred_region
        %v375 = vld [vmem:[#allocation2] sm:$0xff]
        %v376 = vld [vmem:[#allocation2 + $0x8] sm:$0xff]
        %v377 = vsel %vm362, %v375, 0.0
        %v378 = vsel %vm362, %v376, 0.0
        %v379 = vadd.f32 %v377, %v378
        %v380 = vrot.slane %v379, 4
        %v381 = vadd.f32 %v379, %v380
        %v382 = vrot.slane %v381, 2
        %v383 = vadd.f32 %v381, %v382
        %v384 = vrot.slane %v383, 1
        %v385 = vadd.f32 %v383, %v384
        %vm386 = vcmask 0
        %387 = vst.msk [vmem:[%s299] sm:$0x1] %vm386, %v385
        %v388 = vld [vmem:[#allocation3] sm:$0xff]
        %v389 = vld [vmem:[#allocation3 + $0x8] sm:$0xff]
        %v390 = vsel %vm362, %v388, 0.0
        %v391 = vsel %vm362, %v389, 0.0
        %v392 = vadd.f32 %v390, %v391
        %v393 = vrot.slane %v392, 4
        %v394 = vadd.f32 %v392, %v393
        %v395 = vrot.slane %v394, 2
        %v396 = vadd.f32 %v394, %v395
        %v397 = vrot.slane %v396, 1
        %v398 = vadd.f32 %v396, %v397
        %399 = vst.msk [vmem:[%s302] sm:$0x1] %vm386, %v398
      $region40: #{tpu_custom_call.1} parent=31 // pred_fallthru
        _
      %p400 = scmp.lt.s32.totalorder %s20, 1
      %s401 = scalar_select %p400, %s20, 1
      %s402 = scalar_lea.vmem %s3, %s401
      %p403 = scmp.lt.s32.totalorder %s20, 1
      %s404 = scalar_select %p403, %s20, 1
      %s405 = scalar_lea.vmem %s4, %s404
      // Predicated region
      $region41: #{tpu_custom_call.1} parent=31 // pred_check
        %p406 = pneg %p136
      $region42: #{tpu_custom_call.1} parent=31 // pred_check_branch
        %408 = sbr.rel (%p406) target = $region44
      $region43: #{tpu_custom_call.1} parent=31 // pred_region
        _
      $region44: #{tpu_custom_call.1} parent=31 // pred_fallthru
        _
      // Predicated region
      $region45: #{tpu_custom_call.1} parent=31 // pred_check
        %p409 = pneg %p162
      $region46: #{tpu_custom_call.1} parent=31 // pred_check_branch
        %411 = sbr.rel (%p409) target = $region48
      $region47: #{tpu_custom_call.1} parent=31 // pred_region
        _
      $region48: #{tpu_custom_call.1} parent=31 // pred_fallthru
        _
    $region32: #{tpu_custom_call.1} parent=5 // pred_fallthru
      _
    %p412 = scmp.le.s32.totalorder 2, %s11
    // Predicated region
    $region49: #{tpu_custom_call.1} parent=5 // pred_check
      %p413 = pneg %p412
    $region50: #{tpu_custom_call.1} parent=5 // pred_check_branch
      %415 = sbr.rel (%p413) target = $region52
    $region51: #{tpu_custom_call.1} parent=5 // pred_region
      %s416 = ssub.s32 %s11, 2
      // Predicated region
      $region53: #{tpu_custom_call.1} parent=51 // pred_check
        %p417 = pneg %p142
      $region54: #{tpu_custom_call.1} parent=51 // pred_check_branch
        %419 = sbr.rel (%p417) target = $region56
      $region55: #{tpu_custom_call.1} parent=51 // pred_region
        %p420 = scmp.lt.s32.totalorder %s22, 1
        %s421 = scalar_select %p420, %s22, 1
        %s422 = scalar_lea.vmem %s3, %s421
      $region56: #{tpu_custom_call.1} parent=51 // pred_fallthru
        _
      // Predicated region
      $region57: #{tpu_custom_call.1} parent=51 // pred_check
        %p423 = pneg %p168
      $region58: #{tpu_custom_call.1} parent=51 // pred_check_branch
        %425 = sbr.rel (%p423) target = $region60
      $region59: #{tpu_custom_call.1} parent=51 // pred_region
        %p426 = scmp.lt.s32.totalorder %s22, 1
        %s427 = scalar_select %p426, %s22, 1
        %s428 = scalar_lea.vmem %s4, %s427
      $region60: #{tpu_custom_call.1} parent=51 // pred_fallthru
        _
    $region52: #{tpu_custom_call.1} parent=5 // pred_fallthru
      _
  $region6: #{tpu_custom_call.1} parent=0 // loop_footer
    %s15 = sadd.s32 1, %s11
  $region7: #{tpu_custom_call.1} parent=0 // loop_footer_branch
    %10 = sbr.rel target = $region3
  $region8: #{tpu_custom_call.1} parent=0 // loop_exit
    _

</llo_original>
